<compile_context>
chip_gen: v7x
topology: tpu7x:2x2x1
jax: 0.10.0
libtpu: 0.0.40
codegen_flags: <defaults>
</compile_context>

<pallas_src>
import numpy as np
import jax
import jax.numpy as jnp
from jax import lax
from jax.experimental import pallas as pl
from jax.experimental.pallas import tpu as pltpu

_LN_EPS = 1e-6


def _round_up(x, m):
    return ((x + m - 1) // m) * m


def _cls_head_kernel(x_ref, w_ref, b_ref, out_ref, normed_ref):
    """Fused LayerNorm (affine pre-folded into W/b) + Linear over concatenated heads.

    Grid: (i over M tiles [parallel], j over class tiles [arbitrary, innermost]).
      x_ref:      (TM, D)   input tile (block constant across j -> DMA'd once per i)
      w_ref:      (D, TN)   folded weights  W' = gamma[:,None] * W^T   (class tile j)
      b_ref:      (1, TN)   folded bias     b' = beta @ W^T + b
      out_ref:    (TM, TN)  logits tile
      normed_ref: (TM, D)   VMEM scratch caching (x - mean) * rsqrt(var + eps)
    """
    @pl.when(pl.program_id(1) == 0)
    def _():
        x = x_ref[...].astype(jnp.float32)
        d_inv = jnp.float32(1.0 / x.shape[-1])
        mean = jnp.sum(x, axis=-1, keepdims=True) * d_inv
        xc = x - mean                                    # two-pass: no cancellation
        var = jnp.sum(xc * xc, axis=-1, keepdims=True) * d_inv
        normed_ref[...] = (xc * lax.rsqrt(var + _LN_EPS)).astype(normed_ref.dtype)

    logits = jnp.dot(normed_ref[...], w_ref[...], preferred_element_type=jnp.float32)
    out_ref[...] = (logits + b_ref[...].astype(jnp.float32)).astype(out_ref.dtype)


def prepare_classification_head_params(gamma, beta, weights, biases, weights_dtype=None):
    """One-time prep: transpose+concat heads, fold LayerNorm affine, pad class dim.

    Set weights_dtype=jnp.bfloat16 for bf16 MXU operands (f32 accumulation kept);
    default keeps the original weight dtype for bit-faithful f32 semantics.
    """
    sizes = tuple(int(w.shape[0]) for w in weights)
    c_total = int(sum(sizes))
    c_pad = _round_up(max(c_total, 1), 128)

    gamma_f = jnp.asarray(gamma, jnp.float32)
    beta_f = jnp.asarray(beta, jnp.float32)
    w_cat_t = jnp.concatenate(
        [jnp.transpose(jnp.asarray(w, jnp.float32)) for w in weights], axis=1)   # (D, C)
    b_cat = jnp.concatenate([jnp.asarray(b, jnp.float32) for b in biases])       # (C,)

    # ((x-m)*inv*gamma + beta) @ W^T + b  ==  ((x-m)*inv) @ (gamma[:,None]*W^T) + (beta@W^T + b)
    w_fold = gamma_f[:, None] * w_cat_t
    b_fold = beta_f @ w_cat_t + b_cat

    if c_pad != c_total:
        w_fold = jnp.pad(w_fold, ((0, 0), (0, c_pad - c_total)))
        b_fold = jnp.pad(b_fold, (0, c_pad - c_total))

    if weights_dtype is None:
        weights_dtype = jnp.result_type(*[jnp.asarray(w).dtype for w in weights])
    w_fold = w_fold.astype(weights_dtype)

    return dict(w_cat=w_fold, b_cat=b_fold[None, :].astype(jnp.float32),
                sizes=sizes, c_total=c_total, c_pad=c_pad)


def _vmem_estimate(tm, tn, d, act_bytes, w_bytes, out_bytes, nrm_bytes, w_bufs):
    x_tiles = 2 * tm * d * act_bytes                  # double-buffered x tile
    out_tiles = 2 * tm * tn * out_bytes               # double-buffered out tile
    w_tiles = w_bufs * (d * tn * w_bytes + tn * 4)    # weight + bias tiles
    normed = tm * d * nrm_bytes                       # cached normalized tile
    temps = 3 * tm * max(d, tn) * 4                   # f32 in-kernel temporaries
    return x_tiles + out_tiles + w_tiles + normed + temps


def classification_head_apply(x, params):
    """Apply fused LayerNorm + multi-head Linear. Returns list of per-head logits."""
    orig_lead = x.shape[:-1]
    d = int(x.shape[-1])
    m = int(np.prod(orig_lead)) if orig_lead else 1
    x2 = x.reshape(m, d)

    c_pad = params["c_pad"]
    w_cat = params["w_cat"]
    b_cat = params["b_cat"]

    out_dtype = jnp.promote_types(x.dtype, w_cat.dtype)
    nrm_dtype = jnp.bfloat16 if w_cat.dtype == jnp.bfloat16 else jnp.float32

    act_bytes = np.dtype(x.dtype).itemsize
    w_bytes = np.dtype(w_cat.dtype).itemsize
    out_bytes = np.dtype(out_dtype).itemsize
    nrm_bytes = np.dtype(nrm_dtype).itemsize

    # --- Generation-aware VMEM budget (v7x: 64 MiB/TC, v5e/v6e: 128 MiB) ---
    try:
        vmem_cap = int(pltpu.get_tpu_info().vmem_capacity_bytes)
    except Exception:
        vmem_cap = 64 << 20
    if vmem_cap <= (64 << 20):
        vmem_budget, vmem_limit_cap = 44 << 20, 56 << 20
    else:
        vmem_budget, vmem_limit_cap = 100 << 20, 112 << 20

    # --- M tile: sublane-packed, <=256, sized for >=~8 pipelined grid steps ---
    sublane = max(8, 32 // min(act_bytes, out_bytes))
    m_sub = _round_up(m, sublane)
    tm = _round_up(int(pl.cdiv(m_sub, 8)), sublane)
    tm = max(sublane, min(256, tm, m_sub))

    # --- Class tile: keep all heads resident (single-buffered) if they fit ---
    tn, grid_n, w_bufs = c_pad, 1, 1
    if _vmem_estimate(tm, tn, d, act_bytes, w_bytes, out_bytes, nrm_bytes, 1) > vmem_budget:
        tn = min(c_pad, 512 if vmem_cap <= (64 << 20) else 1024)
        grid_n = int(pl.cdiv(c_pad, tn))
        w_bufs = 2 if grid_n > 1 else 1
    while tm > sublane and _vmem_estimate(tm, tn, d, act_bytes, w_bytes, out_bytes,
                                          nrm_bytes, w_bufs) > vmem_budget:
        tm = max(sublane, _round_up(tm // 2, sublane))
    while grid_n > 1 and tn > 128 and _vmem_estimate(tm, tn, d, act_bytes, w_bytes,
                                                     out_bytes, nrm_bytes, w_bufs) > vmem_budget:
        tn = max(128, _round_up(tn // 2, 128))
        grid_n = int(pl.cdiv(c_pad, tn))

    grid_m = int(pl.cdiv(m, tm))   # no wrapper-side pad of x; ragged last tile is masked

    est = _vmem_estimate(tm, tn, d, act_bytes, w_bytes, out_bytes, nrm_bytes, w_bufs)
    vmem_limit = min(max(int(1.3 * est), 32 << 20), vmem_limit_cap)

    if grid_n == 1:   # resident weights/bias -> single-buffer to halve their footprint
        w_spec = pl.BlockSpec((d, tn), lambda i, j: (0, j), pipeline_mode=pl.Buffered(1))
        b_spec = pl.BlockSpec((1, tn), lambda i, j: (0, j), pipeline_mode=pl.Buffered(1))
    else:
        w_spec = pl.BlockSpec((d, tn), lambda i, j: (0, j))
        b_spec = pl.BlockSpec((1, tn), lambda i, j: (0, j))

    out = pl.pallas_call(
        _cls_head_kernel,
        out_shape=jax.ShapeDtypeStruct((m, c_pad), out_dtype),
        grid_spec=pltpu.PrefetchScalarGridSpec(
            num_scalar_prefetch=0,
            grid=(grid_m, grid_n),
            in_specs=[
                pl.BlockSpec((tm, d), lambda i, j: (i, 0)),   # x tile (constant in j)
                w_spec,
                b_spec,
            ],
            out_specs=pl.BlockSpec((tm, tn), lambda i, j: (i, j)),
            scratch_shapes=[pltpu.VMEM((tm, d), nrm_dtype)],
        ),
        compiler_params=pltpu.CompilerParams(
            dimension_semantics=("parallel", "arbitrary"),
            vmem_limit_bytes=vmem_limit,
        ),
    )(x2, w_cat, b_cat)

    # Split the concatenated (padded) logits back into the per-head list.
    logits = []
    off = 0
    for c in params["sizes"]:
        logits.append(out[:, off:off + c].reshape(*orig_lead, c))
        off += c
    return logits


def classification_head(x, gamma, beta, weights, biases):
    """Convenience wrapper: prep params then apply (prefer prepping once)."""
    return classification_head_apply(
        x, prepare_classification_head_params(gamma, beta, weights, biases))


def _reference(x, gamma, beta, weights, biases):
    """Pure-JAX reference matching torch LayerNorm(eps=1e-6) + Linear semantics."""
    xf = x.astype(jnp.float32)
    mean = jnp.mean(xf, axis=-1, keepdims=True)
    var = jnp.mean((xf - mean) ** 2, axis=-1, keepdims=True)
    normed = (xf - mean) / jnp.sqrt(var + 1e-6) * gamma + beta
    return [normed @ w.T + b for w, b in zip(weights, biases)]


if __name__ == "__main__":
    # Small shapes consistent with the module's forward:
    #   x: (batch, seq, large_dim), heads with num_classes = (4, 6)
    batch, seq, large_dim = 2, 8, 32
    num_classes = (4, 6)

    key = jax.random.PRNGKey(0)
    kx, kg, kb, *kheads = jax.random.split(key, 3 + 2 * len(num_classes))

    x = jax.random.normal(kx, (batch, seq, large_dim), dtype=jnp.float32)
    gamma = 1.0 + 0.1 * jax.random.normal(kg, (large_dim,), dtype=jnp.float32)
    beta = 0.1 * jax.random.normal(kb, (large_dim,), dtype=jnp.float32)
    weights, biases = [], []
    for i, nc in enumerate(num_classes):
        kw, kbi = kheads[2 * i], kheads[2 * i + 1]
        weights.append(0.05 * jax.random.normal(kw, (nc, large_dim), dtype=jnp.float32))
        biases.append(0.05 * jax.random.normal(kbi, (nc,), dtype=jnp.float32))

    # Prep the folded/concatenated/padded weights once (outside the hot path).
    params = prepare_classification_head_params(gamma, beta, weights, biases)
    logits = classification_head_apply(x, params)
    logits = [jax.block_until_ready(l) for l in logits]

    ref = _reference(x, gamma, beta, weights, biases)
    for got, want, nc in zip(logits, ref, num_classes):
        assert got.shape == (batch, seq, nc), got.shape
        np.testing.assert_allclose(np.asarray(got), np.asarray(want),
                                   rtol=1e-5, atol=2e-5)

    print("KERNEL_OK")
</pallas_src>

<mosaic_0001>
module attributes {stable_mosaic.version = 11 : i64} {
  func.func @_cls_head_kernel(%arg0: i32, %arg1: i32, %arg2: memref<8x32xf32, #tpu.memory_space<vmem>>, %arg3: memref<32x128xf32, #tpu.memory_space<vmem>>, %arg4: memref<1x128xf32, #tpu.memory_space<vmem>>, %arg5: memref<8x128xf32, #tpu.memory_space<vmem>>, %arg6: memref<8x32xf32, #tpu.memory_space<vmem>>) attributes {dimension_semantics = [#tpu.dimension_semantics<parallel>, #tpu.dimension_semantics<arbitrary>], iteration_bounds = array<i64: 2, 1>, scalar_prefetch = 0 : i64, scratch_operands = 1 : i64, tpu.core_type = #tpu.core_type<tc>, window_params = [{transform_indices = @transform_0, window_bounds = array<i64: 8, 32>}, {pipeline_mode = #tpu.pipeline_mode<synchronous>, transform_indices = @transform_1, window_bounds = array<i64: 32, 128>}, {pipeline_mode = #tpu.pipeline_mode<synchronous>, transform_indices = @transform_2, window_bounds = array<i64: 1, 128>}, {transform_indices = @transform_3, window_bounds = array<i64: 8, 128>}]} {
    %c0_i32 = arith.constant 0 : i32
    %0 = arith.cmpi eq, %arg1, %c0_i32 : i32
    %1 = arith.extui %0 : i1 to i32
    %c0_i32_0 = arith.constant 0 : i32
    %2 = arith.cmpi ne, %1, %c0_i32_0 : i32
    scf.if %2 {
      %c0_8 = arith.constant 0 : index
      %c0_9 = arith.constant 0 : index
      %10 = vector.load %arg2[%c0_8, %c0_9] : memref<8x32xf32, #tpu.memory_space<vmem>>, vector<8x32xf32>
      %cst_10 = arith.constant dense<0.000000e+00> : vector<8xf32>
      %11 = vector.multi_reduction <add>, %10, %cst_10 [1] : vector<8x32xf32> to vector<8xf32>
      %12 = vector.shape_cast %11 : vector<8xf32> to vector<8x1xf32>
      %cst_11 = arith.constant 3.125000e-02 : f32
      %13 = vector.broadcast %cst_11 : f32 to vector<8x1xf32>
      %14 = arith.mulf %12, %13 : vector<8x1xf32>
      %15 = vector.broadcast %14 : vector<8x1xf32> to vector<8x32xf32>
      %16 = arith.subf %10, %15 : vector<8x32xf32>
      %17 = arith.mulf %16, %16 : vector<8x32xf32>
      %cst_12 = arith.constant dense<0.000000e+00> : vector<8xf32>
      %18 = vector.multi_reduction <add>, %17, %cst_12 [1] : vector<8x32xf32> to vector<8xf32>
      %19 = vector.shape_cast %18 : vector<8xf32> to vector<8x1xf32>
      %cst_13 = arith.constant 3.125000e-02 : f32
      %20 = vector.broadcast %cst_13 : f32 to vector<8x1xf32>
      %21 = arith.mulf %19, %20 : vector<8x1xf32>
      %cst_14 = arith.constant 9.99999997E-7 : f32
      %22 = vector.broadcast %cst_14 : f32 to vector<8x1xf32>
      %23 = arith.addf %21, %22 : vector<8x1xf32>
      %24 = math.rsqrt %23 : vector<8x1xf32>
      %25 = vector.broadcast %24 : vector<8x1xf32> to vector<8x32xf32>
      %26 = arith.mulf %16, %25 : vector<8x32xf32>
      %c0_15 = arith.constant 0 : index
      %c0_16 = arith.constant 0 : index
      %27 = vector.load %arg6[%c0_15, %c0_16] : memref<8x32xf32, #tpu.memory_space<vmem>>, vector<8x32xf32>
      tpu.vector_store %arg6[%c0_15, %c0_16], %26 {strides = array<i32>} : memref<8x32xf32, #tpu.memory_space<vmem>>, vector<8x32xf32>,
    } else {
    }
    %c0 = arith.constant 0 : index
    %c0_1 = arith.constant 0 : index
    %3 = vector.load %arg6[%c0, %c0_1] : memref<8x32xf32, #tpu.memory_space<vmem>>, vector<8x32xf32>
    %c0_2 = arith.constant 0 : index
    %c0_3 = arith.constant 0 : index
    %4 = vector.load %arg3[%c0_2, %c0_3] : memref<32x128xf32, #tpu.memory_space<vmem>>, vector<32x128xf32>
    %cst = arith.constant dense<0.000000e+00> : vector<8x128xf32>
    %5 = tpu.matmul %3, %4, %cst {dimension_numbers = #tpu.dot_dimension_numbers<[1], [0], [0], [1], [0, 0, 1, 1], [], []>} : vector<8x32xf32>, vector<32x128xf32>, vector<8x128xf32> -> vector<8x128xf32>
    %c0_4 = arith.constant 0 : index
    %c0_5 = arith.constant 0 : index
    %6 = vector.load %arg4[%c0_4, %c0_5] : memref<1x128xf32, #tpu.memory_space<vmem>>, vector<1x128xf32>
    %7 = vector.broadcast %6 : vector<1x128xf32> to vector<8x128xf32>
    %8 = arith.addf %5, %7 : vector<8x128xf32>
    %c0_6 = arith.constant 0 : index
    %c0_7 = arith.constant 0 : index
    %9 = vector.load %arg5[%c0_6, %c0_7] : memref<8x128xf32, #tpu.memory_space<vmem>>, vector<8x128xf32>
    tpu.vector_store %arg5[%c0_6, %c0_7], %8 {strides = array<i32>} : memref<8x128xf32, #tpu.memory_space<vmem>>, vector<8x128xf32>,
    return
  }
  func.func @transform_0(%arg0: i32, %arg1: i32) -> (i32, i32) {
    %c0_i32 = arith.constant 0 : i32
    %c0_i32_0 = arith.constant 0 : i32
    return %arg0, %c0_i32 : i32, i32
  }
  func.func @transform_1(%arg0: i32, %arg1: i32) -> (i32, i32) {
    %c0_i32 = arith.constant 0 : i32
    %c0_i32_0 = arith.constant 0 : i32
    return %c0_i32, %arg1 : i32, i32
  }
  func.func @transform_2(%arg0: i32, %arg1: i32) -> (i32, i32) {
    %c0_i32 = arith.constant 0 : i32
    %c0_i32_0 = arith.constant 0 : i32
    return %c0_i32, %arg1 : i32, i32
  }
  func.func @transform_3(%arg0: i32, %arg1: i32) -> (i32, i32) {
    %c0_i32 = arith.constant 0 : i32
    return %arg0, %arg1 : i32, i32
  }
}

</mosaic_0001>

<llo_original>
// kernel: tpu_custom_call.1
$region0: #{tpu_custom_call.1}
  #allocation0 [shape = 'u32[]', space=smem, size = 0x4, offset = 0x4, fixed_abs, tag = 'smem constant byte address 0x4 - core index']
  #allocation1 [shape = 'u32[144,128]{1,0:T(1,128)}', space=vmem, size = 0x12000, scoped, tag = 'internal scratch']
  #allocation2 [shape = 'f32[8,32]{1,0:T(8,128)}', space=vmem, size = 0x1000, scoped, tag = 'scratch operand']
  %s0 = inlined_call_operand.hbm [shape: f32[16,32], index: 0, kind: input, shape index: {}]
  %s1 = inlined_call_operand.hbm [shape: f32[32,128], index: 1, kind: input, shape index: {}]
  %s2 = inlined_call_operand.vmem [shape: f32[1,128], index: 2, kind: input, shape index: {}]
  %s3 = inlined_call_operand.hbm [shape: f32[16,128], index: 3, kind: output, shape index: {}]
  %s4 = sld [smem:[#allocation0]]
  $region57: #{tpu_custom_call.1} parent=0
    _
  %s6 = ssub.s32 1, %s4
  %s7 = scalar_select 0, %s6, %s4
  $region1: #{tpu_custom_call.1} parent=0
    #allocation3 [shape = 'u8[8192]{0}', space=vmem, size = 0x2000, scoped, tag = 'input window, operand 0']
    #allocation4 [shape = 's32[2]{0}', space=sflag, size = 0x8, scoped, tag = 'scoped memory for tpu_custom_call.1']
    #allocation5 [shape = 's32[2]{0}', space=sflag, size = 0x8, scoped, tag = 'scoped memory for tpu_custom_call.1']
    #allocation6 [shape = 'u8[16384]{0}', space=vmem, size = 0x4000, scoped, tag = 'input window, operand 1, single buffered']
    #allocation7 [shape = 's32[1]{0}', space=sflag, size = 0x4, scoped, tag = 'scoped memory for tpu_custom_call.1']
    #allocation8 [shape = 'u8[8192]{0}', space=vmem, size = 0x2000, scoped, tag = 'output window, operand 0']
    %8 = vsyncpa [#allocation4], 0
    %s9 = scalar_lea.sflag [#allocation4], 1
    %10 = vsyncpa %s9, 0
    %11 = vsyncpa [#allocation7], 0
    %12 = vsyncpa [#allocation5], 0
    %s13 = scalar_lea.sflag [#allocation5], 1
    %14 = vsyncpa %s13, 0
    loop: start=0, step=1, limit=4
    $region2: #{tpu_custom_call.1} parent=1 // loop_pre_header
      _
    $region3: #{tpu_custom_call.1} parent=1 // loop_header
      %s16 = sphi 0, %s20
      %p17 = scmp.ge.s32.totalorder %s16, 4
      %s23 = sphi 0, %s35
      %s24 = sphi 0, %s31
      %s25 = sphi 0, %s23
      %s26 = sphi 0, %s24
      %s27 = sphi 0, %s25
      %s28 = sphi 0, %s26
      %s38 = sphi 0, %s40
      %s41 = sphi 0, %s38
      %s42 = sphi 0, %s41
      %s58 = sphi 0, %s42
      %s64 = sphi 0, %s66
      %s67 = sphi 0, %s64
      %s68 = sphi 0, %s67
      %s84 = sphi 0, %s68
      %s90 = sphi 0, %s92
      %s93 = sphi 0, %s90
      %s94 = sphi 0, %s93
      %s110 = sphi 0, %s94
      %s118 = sphi 0, %s120
      %s121 = sphi 0, %s118
      %s122 = sphi 0, %s121
      %s138 = sphi 0, %s122
    $region4: #{tpu_custom_call.1} parent=1 // loop_header_branch
      %19 = sbr.rel (%p17) target = $region8
    $region5: #{tpu_custom_call.1} parent=1 // loop_body
      %s21 = ssub.s32 %s16, 1
      %s22 = ssub.s32 %s16, 2
      %s29 = sadd.s32 1, %s24
      %p30 = scmp.ge.s32.totalorder %s29, 1
      %s31 = scalar_select %p30, 0, %s29
      %s32 = sadd.s32 1, %s23
      %s33 = scalar_select %p30, %s32, %s23
      %p34 = scmp.ge.s32.totalorder %s33, 2
      %s35 = scalar_select %p34, 0, %s33
      %s36 = ssub.s32 %s23, %s35
      %p37 = scmp.eq.s32.totalorder %s36, 0
      %s39 = sadd.s32 %s38, 1
      %s40 = scalar_select %p37, %s38, %s39
      %p43 = pneg %p37
      %p44 = scmp.eq.s32.totalorder %s16, 1
      %p45 = por %p43, %p44
      %p46 = scmp.ne.s32.totalorder %s38, %s41
      %p47 = scmp.eq.s32.totalorder %s16, 0
      %p48 = por %p46, %p47
      %p49 = scmp.ne.s32.totalorder %s38, %s41
      %p50 = scmp.eq.s32.totalorder %s21, 1
      %p51 = por %p49, %p50
      %p52 = scmp.ne.s32.totalorder %s41, %s42
      %p53 = scmp.eq.s32.totalorder %s21, 0
      %p54 = por %p52, %p53
      %p55 = scmp.ne.s32.totalorder %s41, %s42
      %p56 = scmp.eq.s32.totalorder %s22, 1
      %p57 = por %p55, %p56
      %p59 = scmp.ne.s32.totalorder %s42, %s58
      %p60 = scmp.eq.s32.totalorder %s22, 0
      %p61 = por %p59, %p60
      %s62 = ssub.s32 %s24, %s31
      %p63 = scmp.eq.s32.totalorder %s62, 0
      %s65 = sadd.s32 %s64, 1
      %s66 = scalar_select %p63, %s64, %s65
      %p69 = pneg %p63
      %p70 = scmp.eq.s32.totalorder %s16, 1
      %p71 = por %p69, %p70
      %p72 = scmp.ne.s32.totalorder %s64, %s67
      %p73 = scmp.eq.s32.totalorder %s16, 0
      %p74 = por %p72, %p73
      %p75 = scmp.ne.s32.totalorder %s64, %s67
      %p76 = scmp.eq.s32.totalorder %s21, 1
      %p77 = por %p75, %p76
      %p78 = scmp.ne.s32.totalorder %s67, %s68
      %p79 = scmp.eq.s32.totalorder %s21, 0
      %p80 = por %p78, %p79
      %p81 = scmp.ne.s32.totalorder %s67, %s68
      %p82 = scmp.eq.s32.totalorder %s22, 1
      %p83 = por %p81, %p82
      %p85 = scmp.ne.s32.totalorder %s68, %s84
      %p86 = scmp.eq.s32.totalorder %s22, 0
      %p87 = por %p85, %p86
      %s88 = ssub.s32 %s24, %s31
      %p89 = scmp.eq.s32.totalorder %s88, 0
      %s91 = sadd.s32 %s90, 1
      %s92 = scalar_select %p89, %s90, %s91
      %p95 = pneg %p89
      %p96 = scmp.eq.s32.totalorder %s16, 1
      %p97 = por %p95, %p96
      %p98 = scmp.ne.s32.totalorder %s90, %s93
      %p99 = scmp.eq.s32.totalorder %s16, 0
      %p100 = por %p98, %p99
      %p101 = scmp.ne.s32.totalorder %s90, %s93
      %p102 = scmp.eq.s32.totalorder %s21, 1
      %p103 = por %p101, %p102
      %p104 = scmp.ne.s32.totalorder %s93, %s94
      %p105 = scmp.eq.s32.totalorder %s21, 0
      %p106 = por %p104, %p105
      %p107 = scmp.ne.s32.totalorder %s93, %s94
      %p108 = scmp.eq.s32.totalorder %s22, 1
      %p109 = por %p107, %p108
      %p111 = scmp.ne.s32.totalorder %s94, %s110
      %p112 = scmp.eq.s32.totalorder %s22, 0
      %p113 = por %p111, %p112
      %s114 = ssub.s32 %s23, %s35
      %s115 = ssub.s32 %s24, %s31
      %s116 = sor.u32 %s114, %s115
      %p117 = scmp.eq.s32.totalorder %s116, 0
      %s119 = sadd.s32 %s118, 1
      %s120 = scalar_select %p117, %s118, %s119
      %p123 = pneg %p117
      %p124 = scmp.eq.s32.totalorder %s16, 1
      %p125 = por %p123, %p124
      %p126 = scmp.ne.s32.totalorder %s118, %s121
      %p127 = scmp.eq.s32.totalorder %s16, 0
      %p128 = por %p126, %p127
      %p129 = scmp.ne.s32.totalorder %s118, %s121
      %p130 = scmp.eq.s32.totalorder %s21, 1
      %p131 = por %p129, %p130
      %p132 = scmp.ne.s32.totalorder %s121, %s122
      %p133 = scmp.eq.s32.totalorder %s21, 0
      %p134 = por %p132, %p133
      %p135 = scmp.ne.s32.totalorder %s121, %s122
      %p136 = scmp.eq.s32.totalorder %s22, 1
      %p137 = por %p135, %p136
      %p139 = scmp.ne.s32.totalorder %s122, %s138
      %p140 = scmp.eq.s32.totalorder %s22, 0
      %p141 = por %p139, %p140
      %p142 = scmp.le.s32.totalorder 1, %s16
      %p143 = scmp.lt.s32.totalorder %s16, 3
      %p144 = pnand %p142, %p143
      %p145 = pneg %p144
      // Predicated region
      $region9: #{tpu_custom_call.1} parent=5 // pred_check
        _
      $region10: #{tpu_custom_call.1} parent=5 // pred_check_branch
        %147 = sbr.rel (%p144) target = $region12
      $region11: #{tpu_custom_call.1} parent=5 // pred_region
        %s148 = ssub.s32 %s16, 1
        // Predicated region
        $region13: #{tpu_custom_call.1} parent=11 // pred_check
          %p149 = pneg %p80
        $region14: #{tpu_custom_call.1} parent=11 // pred_check_branch
          %151 = sbr.rel (%p149) target = $region16
        $region15: #{tpu_custom_call.1} parent=11 // pred_region
          %s153 = ssub.s32 512, 512
          %154 = vsyncadd [#allocation7], %s153
          %s155 = smul.addr %s26, 128
          %s156 = scalar_lea.hbm %s1, %s155
          %s157 = sshll.u32 [#allocation6], 4
          %s158 = int_to_ptr.vmem [resolvable:$true] %s157
          %163 = dma.hbm_to_vmem [thread:$0]  %s156, 512, %s158, [#allocation7], 128, 128, 8
        $region16: #{tpu_custom_call.1} parent=11 // pred_fallthru
          _
        // Predicated region
        $region17: #{tpu_custom_call.1} parent=11 // pred_check
          %p164 = pneg %p106
        $region18: #{tpu_custom_call.1} parent=11 // pred_check_branch
          %166 = sbr.rel (%p164) target = $region20
        $region19: #{tpu_custom_call.1} parent=11 // pred_region
          %p167 = scmp.lt.s32.totalorder %s26, 0
          %s168 = scalar_select %p167, %s26, 0
          %s169 = scalar_lea.vmem %s2, %s168
        $region20: #{tpu_custom_call.1} parent=11 // pred_fallthru
          _
      $region12: #{tpu_custom_call.1} parent=5 // pred_fallthru
        _
      %p170 = scmp.lt.s32.totalorder %s16, 2
      // Predicated region
      $region21: #{tpu_custom_call.1} parent=5 // pred_check
        %p171 = pneg %p170
      $region22: #{tpu_custom_call.1} parent=5 // pred_check_branch
        %173 = sbr.rel (%p171) target = $region24
      $region23: #{tpu_custom_call.1} parent=5 // pred_region
        // Predicated region
        $region25: #{tpu_custom_call.1} parent=23 // pred_check
          %p174 = pneg %p48
        $region26: #{tpu_custom_call.1} parent=23 // pred_check_branch
          %176 = sbr.rel (%p174) target = $region28
        $region27: #{tpu_custom_call.1} parent=23 // pred_region
          %s177 = sand.u32 %s38, 1
          %s178 = scalar_lea.sflag [#allocation4], %s177
          %s179 = sand.u32 %s38, 1
          %s180 = smul.addr %s179, 8
          %s181 = scalar_lea.vmem [#allocation3], %s180
          %s183 = ssub.s32 128, 128
          %184 = vsyncadd %s178, %s183
          %s185 = smul.addr %s23, 128
          %s186 = scalar_lea.hbm %s0, %s185
          %s188 = sshll.u32 %s181, 4
          %s189 = int_to_ptr.vmem [resolvable:$true] %s188
          %191 = dma.hbm_to_vmem [thread:$0]  %s186, 128, %s189, %s178
        $region28: #{tpu_custom_call.1} parent=23 // pred_fallthru
          _
      $region24: #{tpu_custom_call.1} parent=5 // pred_fallthru
        _
      %p192 = scmp.le.s32.totalorder 1, %s16
      %p193 = scmp.lt.s32.totalorder %s16, 3
      %p194 = pnand %p192, %p193
      %p195 = pneg %p194
      // Predicated region
      $region29: #{tpu_custom_call.1} parent=5 // pred_check
        _
      $region30: #{tpu_custom_call.1} parent=5 // pred_check_branch
        %197 = sbr.rel (%p194) target = $region32
      $region31: #{tpu_custom_call.1} parent=5 // pred_region
        %s198 = ssub.s32 %s16, 1
        %s199 = sand.u32 %s41, 1
        %s200 = scalar_lea.sflag [#allocation4], %s199
        %s201 = sand.u32 %s41, 1
        %s202 = smul.addr %s201, 8
        %s203 = scalar_lea.vmem [#allocation3], %s202
        // Predicated region
        $region33: #{tpu_custom_call.1} parent=31 // pred_check
          %p204 = pneg %p54
        $region34: #{tpu_custom_call.1} parent=31 // pred_check_branch
          %206 = sbr.rel (%p204) target = $region36
        $region35: #{tpu_custom_call.1} parent=31 // pred_region
          %207 = dma.done %s200, 128
        $region36: #{tpu_custom_call.1} parent=31 // pred_fallthru
          _
        // Predicated region
        $region37: #{tpu_custom_call.1} parent=31 // pred_check
          %p208 = pneg %p80
        $region38: #{tpu_custom_call.1} parent=31 // pred_check_branch
          %210 = sbr.rel (%p208) target = $region40
        $region39: #{tpu_custom_call.1} parent=31 // pred_region
          %211 = dma.done [#allocation7], 512
        $region40: #{tpu_custom_call.1} parent=31 // pred_fallthru
          _
        %s212 = sand.u32 %s41, 1
        %s213 = scalar_lea.sflag [#allocation4], %s212
        %s214 = sand.u32 %s41, 1
        %s215 = smul.addr %s214, 8
        %s216 = scalar_lea.vmem [#allocation3], %s215
        %p217 = pneg %p54
        %p218 = pneg %p51
        %p219 = pneg %p80
        %p220 = pneg %p77
        %p221 = scmp.lt.s32.totalorder %s26, 0
        %s222 = scalar_select %p221, %s26, 0
        %s223 = scalar_lea.vmem %s2, %s222
        %p224 = pneg %p106
        %p225 = pneg %p103
        %p226 = pneg %p134
        %p227 = pneg %p131
        %s228 = sand.u32 %s121, 1
        %s229 = scalar_lea.sflag [#allocation5], %s228
        %s230 = sand.u32 %s121, 1
        %s231 = smul.addr %s230, 8
        %s232 = scalar_lea.vmem [#allocation8], %s231
        %p233 = scmp.lt.s32.totalorder %s26, 0
        %s234 = scalar_select %p233, %s26, 0
        %s235 = scalar_lea.vmem %s2, %s234
        %p236 = scmp.eq.s32.totalorder %s26, 0
        // Predicated region
        $region41: #{tpu_custom_call.1} parent=31 // pred_check
          %p237 = pneg %p236
        $region42: #{tpu_custom_call.1} parent=31 // pred_check_branch
          %239 = sbr.rel (%p237) target = $region44
        $region43: #{tpu_custom_call.1} parent=31 // pred_region
          %v240 = vld [vmem:[%s203] sm:$0xff]
          %vm241 = vcmask 261120
          %v242 = vsel %vm241, %v240, 0.0
          %243 = vadd.xlane.f32.xlu0 %v242
          %v244 = vpop.xlane.xlu0 %243
          %v245 = vmul.f32 %v244, 0.03125
          %v246 = vsub.f32 %v240, %v245
          %v247 = vmul.f32 %v246, %v246
          %v248 = vsel %vm241, %v247, 0.0
          %249 = vadd.xlane.f32.xlu0 %v248
          %v250 = vpop.xlane.xlu0 %249
          %v251 = vmul.f32 %v250, 0.03125
          %v252 = vadd.f32 %v251, 1e-06
          %v253 = vrsqrt.pop %v252
          %v254 = vmul.f32 %v246, %v253
          %255 = vst.msk [vmem:[#allocation2] sm:$0xff] %vm241, %v254
        $region44: #{tpu_custom_call.1} parent=31 // pred_fallthru
          _
        %v256 = vld [vmem:[#allocation2] sm:$0xff]
        %v257 = vld [vmem:[#allocation6] sm:$0xff]
        %v258 = vld [vmem:[#allocation6 + $0x8] sm:$0xff]
        %v259 = vld [vmem:[#allocation6 + $0x10] sm:$0xff]
        %v260 = vld [vmem:[#allocation6 + $0x18] sm:$0xff]
        %v261 = vld [vmem:[%s235] sm:$0x1]
        %v263 = vlaneseq
        %v264 = vshrl.u32 %v263, 7
        %v265 = vsub.s32 0, %v264
        %v266 = vrot.slane %v261, %v265
        %vm268 = vcmask 261120
        %v270 = vsel %vm268, %v256, 0
        %272 = vmatprep.subr.mxu0 0.0
        %273 = vmatpush1.msra.mxu0 %v257
        %274 = vmatprep.subr.mxu0 0.0
        %275 = vmatpush1.msra.mxu0 %v258
        %276 = vmatprep.subr.mxu0 0.0
        %277 = vmatpush1.msra.mxu0 %v259
        %278 = vmatprep.subr.mxu0 0.0
        %279 = vmatpush1.msra.mxu0 %v260
        %280 = vmatprep.subr.mxu0 0.0
        %281 = vmatpush1.msra.mxu0 0.0
        %282 = vmatprep.subr.mxu0 0.0
        %283 = vmatpush1.msra.mxu0 0.0
        %284 = vmatprep.subr.mxu0 0.0
        %285 = vmatpush1.msra.mxu0 0.0
        %286 = vmatprep.subr.mxu0 0.0
        %287 = vmatpush1.msra.mxu0 0.0
        %288 = vmatprep.subr.mxu0 0.0
        %289 = vmatpush1.msra.mxu0 0.0
        %290 = vmatprep.subr.mxu0 0.0
        %291 = vmatpush1.msra.mxu0 0.0
        %292 = vmatprep.subr.mxu0 0.0
        %293 = vmatpush1.msra.mxu0 0.0
        %294 = vmatprep.subr.mxu0 0.0
        %295 = vmatpush1.msra.mxu0 0.0
        %296 = vmatprep.subr.mxu0 0.0
        %297 = vmatpush1.msra.mxu0 0.0
        %298 = vmatprep.subr.mxu0 0.0
        %299 = vmatpush1.msra.mxu0 0.0
        %300 = vmatprep.subr.mxu0 0.0
        %301 = vmatpush1.msra.mxu0 0.0
        %302 = vmatprep.subr.mxu0 0.0
        %303 = vmatpush1.msra.mxu0 0.0
        %304 = vmatprep.subr.mxu0 0.0
        %305 = vmatpush1.msra.mxu0 0.0
        %306 = vmatprep.subr.mxu0 0.0
        %307 = vmatpush1.msra.mxu0 0.0
        %308 = vmatprep.subr.mxu0 0.0
        %309 = vmatpush1.msra.mxu0 0.0
        %310 = vmatprep.subr.mxu0 0.0
        %311 = vmatpush1.msra.mxu0 0.0
        %312 = vmatprep.subr.mxu0 0.0
        %313 = vmatpush1.msra.mxu0 0.0
        %314 = vmatprep.subr.mxu0 0.0
        %315 = vmatpush1.msra.mxu0 0.0
        %316 = vmatprep.subr.mxu0 0.0
        %317 = vmatpush1.msra.mxu0 0.0
        %318 = vmatprep.subr.mxu0 0.0
        %319 = vmatpush1.msra.mxu0 0.0
        %320 = vmatprep.subr.mxu0 0.0
        %321 = vmatpush1.msra.mxu0 0.0
        %322 = vmatprep.subr.mxu0 0.0
        %323 = vmatpush1.msra.mxu0 0.0
        %324 = vmatprep.subr.mxu0 0.0
        %325 = vmatpush1.msra.mxu0 0.0
        %326 = vmatprep.subr.mxu0 0.0
        %327 = vmatpush1.msra.mxu0 0.0
        %328 = vmatprep.subr.mxu0 0.0
        %329 = vmatpush1.msra.mxu0 0.0
        %330 = vmatprep.subr.mxu0 0.0
        %331 = vmatpush1.msra.mxu0 0.0
        %332 = vmatprep.subr.mxu0 0.0
        %333 = vmatpush1.msra.mxu0 0.0
        %334 = vmatprep.subr.mxu0 0.0
        %335 = vmatpush1.msra.mxu0 0.0
        %336 = vmatprep.mubr.f32.mxu0 0.0
        %337 = vmatmul.mubr.f32.gmra.mrb[0].mxu0 %v270
        %v338 = vpop.f32.mrb[0].mxu0
        %v339 = vadd.f32 %v266, %v338
        %v340 = vpop.f32.mrb[0].mxu0
        %341 = vdwg.mxu0
        %342 = vst [vmem:[%s232] sm:$0xff] %v339
        %s343 = sand.u32 %s121, 1
        %s344 = scalar_lea.sflag [#allocation5], %s343
        %s345 = sand.u32 %s121, 1
        %s346 = smul.addr %s345, 8
        %s347 = scalar_lea.vmem [#allocation8], %s346
        // Predicated region
        $region45: #{tpu_custom_call.1} parent=31 // pred_check
          %p348 = pneg %p131
        $region46: #{tpu_custom_call.1} parent=31 // pred_check_branch
          %350 = sbr.rel (%p348) target = $region48
        $region47: #{tpu_custom_call.1} parent=31 // pred_region
          %s352 = ssub.s32 128, 128
          %353 = vsyncadd %s344, %s352
          %s354 = sadd.s32 %s26, %s25
          %s355 = smul.addr %s354, 128
          %s356 = scalar_lea.hbm %s3, %s355
          %s358 = sshll.u32 %s347, 4
          %s359 = int_to_ptr.vmem [resolvable:$true] %s358
          %361 = dma.vmem_to_hbm [thread:$0]  %s359, 128, %s356, %s344
        $region48: #{tpu_custom_call.1} parent=31 // pred_fallthru
          _
      $region32: #{tpu_custom_call.1} parent=5 // pred_fallthru
        _
      %p362 = scmp.le.s32.totalorder 2, %s16
      // Predicated region
      $region49: #{tpu_custom_call.1} parent=5 // pred_check
        %p363 = pneg %p362
      $region50: #{tpu_custom_call.1} parent=5 // pred_check_branch
        %365 = sbr.rel (%p363) target = $region52
      $region51: #{tpu_custom_call.1} parent=5 // pred_region
        %s366 = ssub.s32 %s16, 2
        // Predicated region
        $region53: #{tpu_custom_call.1} parent=51 // pred_check
          %p367 = pneg %p137
        $region54: #{tpu_custom_call.1} parent=51 // pred_check_branch
          %369 = sbr.rel (%p367) target = $region56
        $region55: #{tpu_custom_call.1} parent=51 // pred_region
          %s370 = sand.u32 %s122, 1
          %s371 = scalar_lea.sflag [#allocation5], %s370
          %s372 = sand.u32 %s122, 1
          %s373 = smul.addr %s372, 8
          %s374 = scalar_lea.vmem [#allocation8], %s373
          %375 = dma.done %s371, 128
        $region56: #{tpu_custom_call.1} parent=51 // pred_fallthru
          _
      $region52: #{tpu_custom_call.1} parent=5 // pred_fallthru
        _
    $region6: #{tpu_custom_call.1} parent=1 // loop_footer
      %s20 = sadd.s32 1, %s16
    $region7: #{tpu_custom_call.1} parent=1 // loop_footer_branch
      %15 = sbr.rel target = $region3
    $region8: #{tpu_custom_call.1} parent=1 // loop_exit
      _
    %376 = vsyncpa [#allocation4], 1
    %s377 = scalar_lea.sflag [#allocation4], 1
    %378 = vsyncpa %s377, 1
    %379 = vsyncpa [#allocation7], 1
    %380 = vsyncpa [#allocation5], 1
    %s381 = scalar_lea.sflag [#allocation5], 1
    %382 = vsyncpa %s381, 1

</llo_original>
